<compile_context>
chip_gen: v6e
topology: v6e:2x2x1
jax: 0.10.0
libtpu: 0.0.40
codegen_flags: <defaults>
</compile_context>

<pallas_src>
import functools

import jax
import jax.numpy as jnp
from jax.experimental import pallas as pl
from jax.experimental.pallas import tpu as pltpu


# ----------------------------------------------------------------------------
# Kernel
# ----------------------------------------------------------------------------
def discriminator_kernel(x_ref, w1_ref, b1_ref, w2_ref, b2_ref, w3_ref, b3_ref,
                         o_ref):
    """Fused 3-layer MLP: two ReLU hidden layers + linear head.

    All operands for one batch-tile live in VMEM; the three matmuls hit the
    MXU back-to-back with bf16 inputs / f32 accumulation, biases + ReLU run
    on the VPU in f32.
    """
    mm_dtype = w1_ref.dtype                                      # bf16 (or f32)

    x = x_ref[...]                                               # (tn, C_in)
    h = jnp.dot(x, w1_ref[...], preferred_element_type=jnp.float32)
    h = jnp.maximum(h + b1_ref[...], 0.0)                        # relu(lin1), f32

    h = jnp.dot(h.astype(mm_dtype), w2_ref[...],
                preferred_element_type=jnp.float32)
    h = jnp.maximum(h + b2_ref[...], 0.0)                        # relu(lin2), f32

    out = jnp.dot(h.astype(mm_dtype), w3_ref[...],
                  preferred_element_type=jnp.float32)
    o_ref[...] = (out + b3_ref[...]).astype(o_ref.dtype)         # lin3


# ----------------------------------------------------------------------------
# Wrapper
# ----------------------------------------------------------------------------
def _round_up(x, m):
    return ((x + m - 1) // m) * m


def _choose_tile_n(n_rows):
    """8-aligned row tile, ~512 rows, >=2 grid steps for large N (v7x megacore)."""
    n8 = _round_up(max(n_rows, 1), 8)          # f32 sublane multiple
    if n8 <= 512:
        return n8                              # small problem: single step
    n_steps = max(2, pl.cdiv(n8, 512))         # amortize ~0.35 us/step overhead
    return _round_up(pl.cdiv(n8, n_steps), 8)


def _make_specs(tile_n, c_in, hidden, c_out, single_buffer_weights):
    # Grid-invariant weights/biases: index_map always (0, 0); single-buffer
    # them so w2 (the big one) is not held twice in VMEM.
    wkw = dict(pipeline_mode=pl.Buffered(1)) if single_buffer_weights else {}
    in_specs = [
        pl.BlockSpec((tile_n, c_in), lambda i: (i, 0)),            # x (tiled)
        pl.BlockSpec((c_in, hidden), lambda i: (0, 0), **wkw),     # w1
        pl.BlockSpec((1, hidden),    lambda i: (0, 0), **wkw),     # b1
        pl.BlockSpec((hidden, hidden), lambda i: (0, 0), **wkw),   # w2
        pl.BlockSpec((1, hidden),    lambda i: (0, 0), **wkw),     # b2
        pl.BlockSpec((hidden, c_out), lambda i: (0, 0), **wkw),    # w3
        pl.BlockSpec((1, c_out),     lambda i: (0, 0), **wkw),     # b3
    ]
    out_spec = pl.BlockSpec((tile_n, c_out), lambda i: (i, 0))
    return in_specs, out_spec


def discriminator_forward(x, params, *, tile_n=None,
                          matmul_dtype=jnp.bfloat16):
    """x: (N, in_channels). params: dict of w1,b1,w2,b2,w3,b3 (f32)."""
    N, C_in = x.shape
    H = params["w1"].shape[1]
    C_out = params["w3"].shape[1]
    out_dtype = x.dtype

    if tile_n is None:
        tile_n = _choose_tile_n(N)
    tile_n = _round_up(tile_n, 8)
    N_pad = _round_up(max(N, 1), tile_n)
    grid = (N_pad // tile_n,)

    # Matmul operands in bf16 (halves HBM->VMEM bytes, feeds the bf16 MXU);
    # biases stay f32 for the VPU bias-add / ReLU path.
    x_mm = x.astype(matmul_dtype)
    if N_pad != N:
        x_mm = jnp.pad(x_mm, ((0, N_pad - N), (0, 0)))
    w1 = params["w1"].astype(matmul_dtype)
    w2 = params["w2"].astype(matmul_dtype)
    w3 = params["w3"].astype(matmul_dtype)
    b1 = params["b1"].astype(jnp.float32)
    b2 = params["b2"].astype(jnp.float32)
    b3 = params["b3"].astype(jnp.float32)

    # VMEM budget: double-buffered x/out tiles + single-buffered weights.
    mm_bytes = jnp.dtype(matmul_dtype).itemsize
    out_bytes = jnp.dtype(out_dtype).itemsize
    need = (2 * tile_n * C_in * mm_bytes                 # x tile, 2 buffers
            + 2 * tile_n * C_out * out_bytes             # out tile, 2 buffers
            + (C_in * H + H * H + H * C_out) * mm_bytes  # weights (resident)
            + (2 * H + C_out) * 4                        # biases
            + tile_n * H * 4 * 2)                        # f32 intermediates
    vmem_limit = int(min(max(4 * need, 32 << 20), 56 << 20))  # < v7x 64 MiB phys

    cost = pl.CostEstimate(
        flops=2 * N_pad * (C_in * H + H * H + H * C_out),
        transcendentals=0,
        bytes_accessed=(N_pad * C_in * mm_bytes
                        + (C_in * H + H * H + H * C_out) * mm_bytes
                        + (2 * H + C_out) * 4
                        + N_pad * C_out * out_bytes),
    )

    def _call(single_buffer_weights):
        in_specs, out_spec = _make_specs(tile_n, C_in, H, C_out,
                                         single_buffer_weights)
        return pl.pallas_call(
            discriminator_kernel,
            out_shape=jax.ShapeDtypeStruct((N_pad, C_out), out_dtype),
            grid_spec=pltpu.PrefetchScalarGridSpec(
                num_scalar_prefetch=0,
                grid=grid,
                in_specs=in_specs,
                out_specs=out_spec,
            ),
            compiler_params=pltpu.CompilerParams(
                dimension_semantics=("parallel",),
                vmem_limit_bytes=vmem_limit,
            ),
            cost_estimate=cost,
        )(x_mm, w1, b1, w2, b2, w3, b3)

    try:
        out = _call(True)          # single-buffered invariant weights
    except Exception:              # pragma: no cover - older jax w/o Buffered(1)
        out = _call(False)

    if N_pad != N:
        out = out[:N]
    return out


# ----------------------------------------------------------------------------
# Init + reference
# ----------------------------------------------------------------------------
def init_params(key, in_channels, hidden_channels, out_channels):
    """Deterministic synthetic init (PyTorch-Linear-like uniform fan-in)."""
    ks = jax.random.split(key, 6)

    def lin(kw, kb, fan_in, fan_out):
        bound = 1.0 / jnp.sqrt(fan_in)
        w = jax.random.uniform(kw, (fan_in, fan_out), jnp.float32,
                               -bound, bound)
        b = jax.random.uniform(kb, (1, fan_out), jnp.float32, -bound, bound)
        return w, b

    w1, b1 = lin(ks[0], ks[1], in_channels, hidden_channels)
    w2, b2 = lin(ks[2], ks[3], hidden_channels, hidden_channels)
    w3, b3 = lin(ks[4], ks[5], hidden_channels, out_channels)
    return dict(w1=w1, b1=b1, w2=w2, b2=b2, w3=w3, b3=b3)


def reference_forward(x, p, mm_dtype=jnp.float32):
    """Pure-JAX reference mirroring the kernel's matmul dtype."""
    def dot(a, w):
        return jnp.dot(a.astype(mm_dtype), w.astype(mm_dtype),
                       preferred_element_type=jnp.float32)

    h = jnp.maximum(dot(x, p["w1"]) + p["b1"], 0.0)
    h = jnp.maximum(dot(h, p["w2"]) + p["b2"], 0.0)
    return dot(h, p["w3"]) + p["b3"]


# ----------------------------------------------------------------------------
# Self-test
# ----------------------------------------------------------------------------
if __name__ == "__main__":
    key = jax.random.PRNGKey(0)
    k_x, k_p = jax.random.split(key)

    # Small shapes consistent with the module; ragged N exercises the
    # pad-and-slice remainder handling.
    N, in_channels, hidden_channels, out_channels = 10, 32, 64, 16

    x = jax.random.normal(k_x, (N, in_channels), jnp.float32)
    params = init_params(k_p, in_channels, hidden_channels, out_channels)

    out = discriminator_forward(x, params)
    out = jax.block_until_ready(out)
    assert out.shape == (N, out_channels)

    # Tight check against a reference using the same bf16 matmul path.
    ref_bf16 = reference_forward(x, params, mm_dtype=jnp.bfloat16)
    assert jnp.allclose(out, ref_bf16, atol=1e-2, rtol=1e-2)

    # Loose check against the exact f32 semantics of the PyTorch module.
    ref_f32 = reference_forward(x, params, mm_dtype=jnp.float32)
    assert jnp.allclose(out, ref_f32, atol=5e-2, rtol=5e-2)

    print("KERNEL_OK")
</pallas_src>

<mosaic_0001>
module attributes {stable_mosaic.version = 11 : i64} {
  func.func @discriminator_kernel(%arg0: i32, %arg1: memref<16x32xbf16, #tpu.memory_space<vmem>>, %arg2: memref<32x64xbf16, #tpu.memory_space<vmem>>, %arg3: memref<1x64xf32, #tpu.memory_space<vmem>>, %arg4: memref<64x64xbf16, #tpu.memory_space<vmem>>, %arg5: memref<1x64xf32, #tpu.memory_space<vmem>>, %arg6: memref<64x16xbf16, #tpu.memory_space<vmem>>, %arg7: memref<1x16xf32, #tpu.memory_space<vmem>>, %arg8: memref<16x16xf32, #tpu.memory_space<vmem>>) attributes {dimension_semantics = [#tpu.dimension_semantics<parallel>], iteration_bounds = array<i64: 1>, scalar_prefetch = 0 : i64, scratch_operands = 0 : i64, tpu.core_type = #tpu.core_type<tc>, window_params = [{transform_indices = @transform_0, window_bounds = array<i64: 16, 32>}, {pipeline_mode = #tpu.pipeline_mode<synchronous>, transform_indices = @transform_1, window_bounds = array<i64: 32, 64>}, {pipeline_mode = #tpu.pipeline_mode<synchronous>, transform_indices = @transform_2, window_bounds = array<i64: 1, 64>}, {pipeline_mode = #tpu.pipeline_mode<synchronous>, transform_indices = @transform_3, window_bounds = array<i64: 64, 64>}, {pipeline_mode = #tpu.pipeline_mode<synchronous>, transform_indices = @transform_4, window_bounds = array<i64: 1, 64>}, {pipeline_mode = #tpu.pipeline_mode<synchronous>, transform_indices = @transform_5, window_bounds = array<i64: 64, 16>}, {pipeline_mode = #tpu.pipeline_mode<synchronous>, transform_indices = @transform_6, window_bounds = array<i64: 1, 16>}, {transform_indices = @transform_7, window_bounds = array<i64: 16, 16>}]} {
    %c0 = arith.constant 0 : index
    %c0_0 = arith.constant 0 : index
    %0 = vector.load %arg1[%c0, %c0_0] : memref<16x32xbf16, #tpu.memory_space<vmem>>, vector<16x32xbf16>
    %c0_1 = arith.constant 0 : index
    %c0_2 = arith.constant 0 : index
    %1 = vector.load %arg2[%c0_1, %c0_2] : memref<32x64xbf16, #tpu.memory_space<vmem>>, vector<32x64xbf16>
    %cst = arith.constant dense<0.000000e+00> : vector<16x64xf32>
    %2 = tpu.matmul %0, %1, %cst {dimension_numbers = #tpu.dot_dimension_numbers<[1], [0], [0], [1], [0, 0, 1, 1], [], []>} : vector<16x32xbf16>, vector<32x64xbf16>, vector<16x64xf32> -> vector<16x64xf32>
    %c0_3 = arith.constant 0 : index
    %c0_4 = arith.constant 0 : index
    %3 = vector.load %arg3[%c0_3, %c0_4] : memref<1x64xf32, #tpu.memory_space<vmem>>, vector<1x64xf32>
    %4 = vector.broadcast %3 : vector<1x64xf32> to vector<16x64xf32>
    %5 = arith.addf %2, %4 : vector<16x64xf32>
    %cst_5 = arith.constant 0.000000e+00 : f32
    %6 = vector.broadcast %cst_5 : f32 to vector<16x64xf32>
    %7 = arith.maximumf %5, %6 : vector<16x64xf32>
    %8 = arith.truncf %7 : vector<16x64xf32> to vector<16x64xbf16>
    %c0_6 = arith.constant 0 : index
    %c0_7 = arith.constant 0 : index
    %9 = vector.load %arg4[%c0_6, %c0_7] : memref<64x64xbf16, #tpu.memory_space<vmem>>, vector<64x64xbf16>
    %cst_8 = arith.constant dense<0.000000e+00> : vector<16x64xf32>
    %10 = tpu.matmul %8, %9, %cst_8 {dimension_numbers = #tpu.dot_dimension_numbers<[1], [0], [0], [1], [0, 0, 1, 1], [], []>} : vector<16x64xbf16>, vector<64x64xbf16>, vector<16x64xf32> -> vector<16x64xf32>
    %c0_9 = arith.constant 0 : index
    %c0_10 = arith.constant 0 : index
    %11 = vector.load %arg5[%c0_9, %c0_10] : memref<1x64xf32, #tpu.memory_space<vmem>>, vector<1x64xf32>
    %12 = vector.broadcast %11 : vector<1x64xf32> to vector<16x64xf32>
    %13 = arith.addf %10, %12 : vector<16x64xf32>
    %cst_11 = arith.constant 0.000000e+00 : f32
    %14 = vector.broadcast %cst_11 : f32 to vector<16x64xf32>
    %15 = arith.maximumf %13, %14 : vector<16x64xf32>
    %16 = arith.truncf %15 : vector<16x64xf32> to vector<16x64xbf16>
    %c0_12 = arith.constant 0 : index
    %c0_13 = arith.constant 0 : index
    %17 = vector.load %arg6[%c0_12, %c0_13] : memref<64x16xbf16, #tpu.memory_space<vmem>>, vector<64x16xbf16>
    %cst_14 = arith.constant dense<0.000000e+00> : vector<16x16xf32>
    %18 = tpu.matmul %16, %17, %cst_14 {dimension_numbers = #tpu.dot_dimension_numbers<[1], [0], [0], [1], [0, 0, 1, 1], [], []>} : vector<16x64xbf16>, vector<64x16xbf16>, vector<16x16xf32> -> vector<16x16xf32>
    %c0_15 = arith.constant 0 : index
    %c0_16 = arith.constant 0 : index
    %19 = vector.load %arg7[%c0_15, %c0_16] : memref<1x16xf32, #tpu.memory_space<vmem>>, vector<1x16xf32>
    %20 = vector.broadcast %19 : vector<1x16xf32> to vector<16x16xf32>
    %21 = arith.addf %18, %20 : vector<16x16xf32>
    %c0_17 = arith.constant 0 : index
    %c0_18 = arith.constant 0 : index
    %22 = vector.load %arg8[%c0_17, %c0_18] : memref<16x16xf32, #tpu.memory_space<vmem>>, vector<16x16xf32>
    tpu.vector_store %arg8[%c0_17, %c0_18], %21 {strides = array<i32>} : memref<16x16xf32, #tpu.memory_space<vmem>>, vector<16x16xf32>,
    return
  }
  func.func @transform_0(%arg0: i32) -> (i32, i32) {
    %c0_i32 = arith.constant 0 : i32
    %c0_i32_0 = arith.constant 0 : i32
    return %arg0, %c0_i32 : i32, i32
  }
  func.func @transform_1(%arg0: i32) -> (i32, i32) {
    %c0_i32 = arith.constant 0 : i32
    %c0_i32_0 = arith.constant 0 : i32
    %c0_i32_1 = arith.constant 0 : i32
    return %c0_i32, %c0_i32_0 : i32, i32
  }
  func.func @transform_2(%arg0: i32) -> (i32, i32) {
    %c0_i32 = arith.constant 0 : i32
    %c0_i32_0 = arith.constant 0 : i32
    %c0_i32_1 = arith.constant 0 : i32
    return %c0_i32, %c0_i32_0 : i32, i32
  }
  func.func @transform_3(%arg0: i32) -> (i32, i32) {
    %c0_i32 = arith.constant 0 : i32
    %c0_i32_0 = arith.constant 0 : i32
    %c0_i32_1 = arith.constant 0 : i32
    return %c0_i32, %c0_i32_0 : i32, i32
  }
  func.func @transform_4(%arg0: i32) -> (i32, i32) {
    %c0_i32 = arith.constant 0 : i32
    %c0_i32_0 = arith.constant 0 : i32
    %c0_i32_1 = arith.constant 0 : i32
    return %c0_i32, %c0_i32_0 : i32, i32
  }
  func.func @transform_5(%arg0: i32) -> (i32, i32) {
    %c0_i32 = arith.constant 0 : i32
    %c0_i32_0 = arith.constant 0 : i32
    %c0_i32_1 = arith.constant 0 : i32
    return %c0_i32, %c0_i32_0 : i32, i32
  }
  func.func @transform_6(%arg0: i32) -> (i32, i32) {
    %c0_i32 = arith.constant 0 : i32
    %c0_i32_0 = arith.constant 0 : i32
    %c0_i32_1 = arith.constant 0 : i32
    return %c0_i32, %c0_i32_0 : i32, i32
  }
  func.func @transform_7(%arg0: i32) -> (i32, i32) {
    %c0_i32 = arith.constant 0 : i32
    %c0_i32_0 = arith.constant 0 : i32
    return %arg0, %c0_i32 : i32, i32
  }
}

module attributes {stable_mosaic.version = 11 : i64} {
  func.func @discriminator_kernel(%arg0: i32, %arg1: memref<16x32xbf16, #tpu.memory_space<vmem>>, %arg2: memref<32x64xbf16, #tpu.memory_space<vmem>>, %arg3: memref<1x64xf32, #tpu.memory_space<vmem>>, %arg4: memref<64x64xbf16, #tpu.memory_space<vmem>>, %arg5: memref<1x64xf32, #tpu.memory_space<vmem>>, %arg6: memref<64x16xbf16, #tpu.memory_space<vmem>>, %arg7: memref<1x16xf32, #tpu.memory_space<vmem>>, %arg8: memref<16x16xf32, #tpu.memory_space<vmem>>) attributes {dimension_semantics = [#tpu.dimension_semantics<parallel>], iteration_bounds = array<i64: 1>, scalar_prefetch = 0 : i64, scratch_operands = 0 : i64, tpu.core_type = #tpu.core_type<tc>, window_params = [{transform_indices = @transform_0, window_bounds = array<i64: 16, 32>}, {pipeline_mode = #tpu.pipeline_mode<synchronous>, transform_indices = @transform_1, window_bounds = array<i64: 32, 64>}, {pipeline_mode = #tpu.pipeline_mode<synchronous>, transform_indices = @transform_2, window_bounds = array<i64: 1, 64>}, {pipeline_mode = #tpu.pipeline_mode<synchronous>, transform_indices = @transform_3, window_bounds = array<i64: 64, 64>}, {pipeline_mode = #tpu.pipeline_mode<synchronous>, transform_indices = @transform_4, window_bounds = array<i64: 1, 64>}, {pipeline_mode = #tpu.pipeline_mode<synchronous>, transform_indices = @transform_5, window_bounds = array<i64: 64, 16>}, {pipeline_mode = #tpu.pipeline_mode<synchronous>, transform_indices = @transform_6, window_bounds = array<i64: 1, 16>}, {transform_indices = @transform_7, window_bounds = array<i64: 16, 16>}]} {
    %c0 = arith.constant 0 : index
    %c0_0 = arith.constant 0 : index
    %0 = vector.load %arg1[%c0, %c0_0] : memref<16x32xbf16, #tpu.memory_space<vmem>>, vector<16x32xbf16>
    %c0_1 = arith.constant 0 : index
    %c0_2 = arith.constant 0 : index
    %1 = vector.load %arg2[%c0_1, %c0_2] : memref<32x64xbf16, #tpu.memory_space<vmem>>, vector<32x64xbf16>
    %cst = arith.constant dense<0.000000e+00> : vector<16x64xf32>
    %2 = tpu.matmul %0, %1, %cst {dimension_numbers = #tpu.dot_dimension_numbers<[1], [0], [0], [1], [0, 0, 1, 1], [], []>} : vector<16x32xbf16>, vector<32x64xbf16>, vector<16x64xf32> -> vector<16x64xf32>
    %c0_3 = arith.constant 0 : index
    %c0_4 = arith.constant 0 : index
    %3 = vector.load %arg3[%c0_3, %c0_4] : memref<1x64xf32, #tpu.memory_space<vmem>>, vector<1x64xf32>
    %4 = vector.broadcast %3 : vector<1x64xf32> to vector<16x64xf32>
    %5 = arith.addf %2, %4 : vector<16x64xf32>
    %cst_5 = arith.constant 0.000000e+00 : f32
    %6 = vector.broadcast %cst_5 : f32 to vector<16x64xf32>
    %7 = arith.maximumf %5, %6 : vector<16x64xf32>
    %8 = arith.truncf %7 : vector<16x64xf32> to vector<16x64xbf16>
    %c0_6 = arith.constant 0 : index
    %c0_7 = arith.constant 0 : index
    %9 = vector.load %arg4[%c0_6, %c0_7] : memref<64x64xbf16, #tpu.memory_space<vmem>>, vector<64x64xbf16>
    %cst_8 = arith.constant dense<0.000000e+00> : vector<16x64xf32>
    %10 = tpu.matmul %8, %9, %cst_8 {dimension_numbers = #tpu.dot_dimension_numbers<[1], [0], [0], [1], [0, 0, 1, 1], [], []>} : vector<16x64xbf16>, vector<64x64xbf16>, vector<16x64xf32> -> vector<16x64xf32>
    %c0_9 = arith.constant 0 : index
    %c0_10 = arith.constant 0 : index
    %11 = vector.load %arg5[%c0_9, %c0_10] : memref<1x64xf32, #tpu.memory_space<vmem>>, vector<1x64xf32>
    %12 = vector.broadcast %11 : vector<1x64xf32> to vector<16x64xf32>
    %13 = arith.addf %10, %12 : vector<16x64xf32>
    %cst_11 = arith.constant 0.000000e+00 : f32
    %14 = vector.broadcast %cst_11 : f32 to vector<16x64xf32>
    %15 = arith.maximumf %13, %14 : vector<16x64xf32>
    %16 = arith.truncf %15 : vector<16x64xf32> to vector<16x64xbf16>
    %c0_12 = arith.constant 0 : index
    %c0_13 = arith.constant 0 : index
    %17 = vector.load %arg6[%c0_12, %c0_13] : memref<64x16xbf16, #tpu.memory_space<vmem>>, vector<64x16xbf16>
    %cst_14 = arith.constant dense<0.000000e+00> : vector<16x16xf32>
    %18 = tpu.matmul %16, %17, %cst_14 {dimension_numbers = #tpu.dot_dimension_numbers<[1], [0], [0], [1], [0, 0, 1, 1], [], []>} : vector<16x64xbf16>, vector<64x16xbf16>, vector<16x16xf32> -> vector<16x16xf32>
    %c0_15 = arith.constant 0 : index
    %c0_16 = arith.constant 0 : index
    %19 = vector.load %arg7[%c0_15, %c0_16] : memref<1x16xf32, #tpu.memory_space<vmem>>, vector<1x16xf32>
    %20 = vector.broadcast %19 : vector<1x16xf32> to vector<16x16xf32>
    %21 = arith.addf %18, %20 : vector<16x16xf32>
    %c0_17 = arith.constant 0 : index
    %c0_18 = arith.constant 0 : index
    %22 = vector.load %arg8[%c0_17, %c0_18] : memref<16x16xf32, #tpu.memory_space<vmem>>, vector<16x16xf32>
    tpu.vector_store %arg8[%c0_17, %c0_18], %21 {strides = array<i32>} : memref<16x16xf32, #tpu.memory_space<vmem>>, vector<16x16xf32>,
    return
  }
  func.func @transform_0(%arg0: i32) -> (i32, i32) {
    %c0_i32 = arith.constant 0 : i32
    %c0_i32_0 = arith.constant 0 : i32
    return %arg0, %c0_i32 : i32, i32
  }
  func.func @transform_1(%arg0: i32) -> (i32, i32) {
    %c0_i32 = arith.constant 0 : i32
    %c0_i32_0 = arith.constant 0 : i32
    %c0_i32_1 = arith.constant 0 : i32
    return %c0_i32, %c0_i32_0 : i32, i32
  }
  func.func @transform_2(%arg0: i32) -> (i32, i32) {
    %c0_i32 = arith.constant 0 : i32
    %c0_i32_0 = arith.constant 0 : i32
    %c0_i32_1 = arith.constant 0 : i32
    return %c0_i32, %c0_i32_0 : i32, i32
  }
  func.func @transform_3(%arg0: i32) -> (i32, i32) {
    %c0_i32 = arith.constant 0 : i32
    %c0_i32_0 = arith.constant 0 : i32
    %c0_i32_1 = arith.constant 0 : i32
    return %c0_i32, %c0_i32_0 : i32, i32
  }
  func.func @transform_4(%arg0: i32) -> (i32, i32) {
    %c0_i32 = arith.constant 0 : i32
    %c0_i32_0 = arith.constant 0 : i32
    %c0_i32_1 = arith.constant 0 : i32
    return %c0_i32, %c0_i32_0 : i32, i32
  }
  func.func @transform_5(%arg0: i32) -> (i32, i32) {
    %c0_i32 = arith.constant 0 : i32
    %c0_i32_0 = arith.constant 0 : i32
    %c0_i32_1 = arith.constant 0 : i32
    return %c0_i32, %c0_i32_0 : i32, i32
  }
  func.func @transform_6(%arg0: i32) -> (i32, i32) {
    %c0_i32 = arith.constant 0 : i32
    %c0_i32_0 = arith.constant 0 : i32
    %c0_i32_1 = arith.constant 0 : i32
    return %c0_i32, %c0_i32_0 : i32, i32
  }
  func.func @transform_7(%arg0: i32) -> (i32, i32) {
    %c0_i32 = arith.constant 0 : i32
    %c0_i32_0 = arith.constant 0 : i32
    return %arg0, %c0_i32 : i32, i32
  }
}

</mosaic_0001>

<llo_original>
// kernel: tpu_custom_call.1
$region0: #{tpu_custom_call.1}
  #allocation0 [shape = 'u32[]', space=smem, size = 0x4, offset = 0x4, fixed_abs, tag = 'smem constant byte address 0x4 - core index']
  #allocation1 [shape = 'u32[144,128]{1,0:T(1,128)}', space=vmem, size = 0x12000, scoped, tag = 'internal scratch']
  %s0 = inlined_call_operand.vmem [shape: bf16[16,32], index: 0, kind: input, shape index: {}]
  %s1 = inlined_call_operand.hbm [shape: bf16[32,64], index: 1, kind: input, shape index: {}]
  %s2 = inlined_call_operand.vmem [shape: f32[1,64], index: 2, kind: input, shape index: {}]
  %s3 = inlined_call_operand.vmem [shape: bf16[64,64], index: 3, kind: input, shape index: {}]
  %s4 = inlined_call_operand.hbm [shape: f32[1,64], index: 4, kind: input, shape index: {}]
  %s5 = inlined_call_operand.vmem [shape: bf16[64,16], index: 5, kind: input, shape index: {}]
  %s6 = inlined_call_operand.vmem [shape: f32[1,16], index: 6, kind: input, shape index: {}]
  %s7 = inlined_call_operand.hbm [shape: f32[16,16], index: 7, kind: output, shape index: {}]
  %s8 = sld [smem:[#allocation0]]
  $region46: #{tpu_custom_call.1} parent=0
    _
  %s10 = ssub.s32 1, %s8
  %s11 = scalar_select 0, %s10, %s8
  $region1: #{tpu_custom_call.1} parent=0
    #allocation2 [shape = 'u8[8192]{0}', space=vmem, size = 0x2000, scoped, tag = 'input window, operand 1, single buffered']
    #allocation3 [shape = 's32[1]{0}', space=sflag, size = 0x4, scoped, tag = 'scoped memory for tpu_custom_call.1']
    #allocation4 [shape = 's32[1]{0}', space=sflag, size = 0x4, scoped, tag = 'scoped memory for tpu_custom_call.1']
    #allocation5 [shape = 'u8[512]{0}', space=vmem, size = 0x400, scoped, tag = 'input window, operand 4, single buffered']
    #allocation6 [shape = 's32[1]{0}', space=sflag, size = 0x4, scoped, tag = 'scoped memory for tpu_custom_call.1']
    #allocation7 [shape = 'u8[8192]{0}', space=vmem, size = 0x2000, scoped, tag = 'output window, operand 0, single buffered']
    %12 = vsyncpa [#allocation3], 0
    %13 = vsyncpa [#allocation6], 0
    %14 = vsyncpa [#allocation4], 0
    // Predicated region
    $region2: #{tpu_custom_call.1} parent=1 // pred_check
      _
    $region3: #{tpu_custom_call.1} parent=1 // pred_check_branch
      %16 = sbr.rel (0) target = $region5
    $region4: #{tpu_custom_call.1} parent=1 // pred_region
      _
    $region5: #{tpu_custom_call.1} parent=1 // pred_fallthru
      _
    // Predicated region
    $region6: #{tpu_custom_call.1} parent=1 // pred_check
      _
    $region7: #{tpu_custom_call.1} parent=1 // pred_check_branch
      %18 = sbr.rel (0) target = $region9
    $region8: #{tpu_custom_call.1} parent=1 // pred_region
      %s20 = ssub.s32 256, 256
      %21 = vsyncadd [#allocation3], %s20
      %s22 = sshll.u32 [#allocation2], 4
      %s23 = int_to_ptr.vmem [resolvable:$true] %s22
      %28 = dma.hbm_to_vmem [thread:$0]  %s1, 256, %s23, [#allocation3], 64, 64, 4
    $region9: #{tpu_custom_call.1} parent=1 // pred_fallthru
      _
    // Predicated region
    $region10: #{tpu_custom_call.1} parent=1 // pred_check
      _
    $region11: #{tpu_custom_call.1} parent=1 // pred_check_branch
      %30 = sbr.rel (0) target = $region13
    $region12: #{tpu_custom_call.1} parent=1 // pred_region
      _
    $region13: #{tpu_custom_call.1} parent=1 // pred_fallthru
      _
    // Predicated region
    $region14: #{tpu_custom_call.1} parent=1 // pred_check
      _
    $region15: #{tpu_custom_call.1} parent=1 // pred_check_branch
      %32 = sbr.rel (0) target = $region17
    $region16: #{tpu_custom_call.1} parent=1 // pred_region
      _
    $region17: #{tpu_custom_call.1} parent=1 // pred_fallthru
      _
    // Predicated region
    $region18: #{tpu_custom_call.1} parent=1 // pred_check
      _
    $region19: #{tpu_custom_call.1} parent=1 // pred_check_branch
      %34 = sbr.rel (0) target = $region21
    $region20: #{tpu_custom_call.1} parent=1 // pred_region
      %s36 = ssub.s32 16, 16
      %37 = vsyncadd [#allocation6], %s36
      %s39 = sshll.u32 [#allocation5], 4
      %s40 = int_to_ptr.vmem [resolvable:$true] %s39
      %42 = dma.hbm_to_vmem [thread:$0]  %s4, 16, %s40, [#allocation6]
    $region21: #{tpu_custom_call.1} parent=1 // pred_fallthru
      _
    // Predicated region
    $region22: #{tpu_custom_call.1} parent=1 // pred_check
      _
    $region23: #{tpu_custom_call.1} parent=1 // pred_check_branch
      %44 = sbr.rel (0) target = $region25
    $region24: #{tpu_custom_call.1} parent=1 // pred_region
      _
    $region25: #{tpu_custom_call.1} parent=1 // pred_fallthru
      _
    // Predicated region
    $region26: #{tpu_custom_call.1} parent=1 // pred_check
      _
    $region27: #{tpu_custom_call.1} parent=1 // pred_check_branch
      %46 = sbr.rel (0) target = $region29
    $region28: #{tpu_custom_call.1} parent=1 // pred_region
      _
    $region29: #{tpu_custom_call.1} parent=1 // pred_fallthru
      _
    // Predicated region
    $region30: #{tpu_custom_call.1} parent=1 // pred_check
      _
    $region31: #{tpu_custom_call.1} parent=1 // pred_check_branch
      %48 = sbr.rel (0) target = $region33
    $region32: #{tpu_custom_call.1} parent=1 // pred_region
      %49 = dma.done [#allocation3], 256
    $region33: #{tpu_custom_call.1} parent=1 // pred_fallthru
      _
    // Predicated region
    $region34: #{tpu_custom_call.1} parent=1 // pred_check
      _
    $region35: #{tpu_custom_call.1} parent=1 // pred_check_branch
      %51 = sbr.rel (0) target = $region37
    $region36: #{tpu_custom_call.1} parent=1 // pred_region
      %52 = dma.done [#allocation6], 16
    $region37: #{tpu_custom_call.1} parent=1 // pred_fallthru
      _
    %v54 = vld [vmem:[%s0] sm:$0xf]
    %v55 = vld [vmem:[%s0 + $0x4] sm:$0xf]
    %v56 = vld [vmem:[#allocation2] sm:$0xf]
    %v57 = vld [vmem:[#allocation2 + $0x4] sm:$0xf]
    %v58 = vld [vmem:[#allocation2 + $0x8] sm:$0xf]
    %v59 = vld [vmem:[#allocation2 + $0xc] sm:$0xf]
    %v60 = vld [vmem:[%s2] sm:$0x1]
    %v62 = vlaneseq
    %v63 = vshrl.u32 %v62, 7
    %v64 = vsub.s32 0, %v63
    %v65 = vrot.slane %v60, %v64
    %v69 = vunpack.c.l.b16 %v54
    %v70 = vunpack.c.l.b16 %v55
    %v71 = vpack.c.b16 %v70, %v69
    %v76 = vunpack.c.l.b16 %v56
    %v77 = vunpack.c.l.b16 %v57
    %v78 = vunpack.c.l.b16 %v58
    %v79 = vunpack.c.l.b16 %v59
    %v80 = vpack.c.b16 %v77, %v76
    %v81 = vpack.c.b16 %v79, %v78
    %vm84 = vcmask 261120
    %v86 = vsel %vm84, %v71, 0
    %88 = vmatprep.subr.bf16.mxu0 0
    %89 = vmatpush1.bf16.msra.mxu0 0
    %90 = vmatprep.subr.bf16.mxu0 0
    %91 = vmatpush1.bf16.msra.mxu0 0
    %92 = vmatprep.subr.bf16.mxu0 0
    %93 = vmatpush1.bf16.msra.mxu0 0
    %94 = vmatprep.subr.bf16.mxu0 0
    %95 = vmatpush1.bf16.msra.mxu0 0
    %96 = vmatprep.subr.bf16.mxu0 0
    %97 = vmatpush1.bf16.msra.mxu0 0
    %98 = vmatprep.subr.bf16.mxu0 0
    %99 = vmatpush1.bf16.msra.mxu0 0
    %100 = vmatprep.subr.bf16.mxu0 0
    %101 = vmatpush1.bf16.msra.mxu0 %v81
    %102 = vmatprep.subr.bf16.mxu0 0
    %103 = vmatpush1.bf16.msra.mxu0 %v80
    %104 = vmatprep.subr.bf16.mxu0 0
    %105 = vmatpush2.bf16.msra.mxu0 0
    %106 = vmatprep.subr.bf16.mxu0 0
    %107 = vmatpush2.bf16.msra.mxu0 0
    %108 = vmatprep.subr.bf16.mxu0 0
    %109 = vmatpush2.bf16.msra.mxu0 0
    %110 = vmatprep.subr.bf16.mxu0 0
    %111 = vmatpush2.bf16.msra.mxu0 0
    %112 = vmatprep.subr.bf16.mxu0 0
    %113 = vmatpush2.bf16.msra.mxu0 0
    %114 = vmatprep.subr.bf16.mxu0 0
    %115 = vmatpush2.bf16.msra.mxu0 0
    %116 = vmatprep.subr.bf16.mxu0 0
    %117 = vmatpush2.bf16.msra.mxu0 0
    %118 = vmatprep.subr.bf16.mxu0 0
    %119 = vmatpush2.bf16.msra.mxu0 0
    %120 = vmatprep.mubr.bf16.mxu0 0
    %121 = vmatmul.mubr.bf16.gmra.mxu0 %v86
    %v122 = vpop.f32.mrf.mxu0
    %v123 = vadd.f32 %v65, %v122
    %v124 = vpop.f32.mrf.mxu0
    %v125 = vpop.f32.mrf.mxu0
    %v126 = vadd.f32 %v65, %v125
    %v127 = vpop.f32.mrf.mxu0
    %128 = vdwg.mxu0
    %v129 = vmax.f32 %v123, 0.0
    %v130 = vmax.f32 %v126, 0.0
    %v131 = vpack.c.bf16 %v130, %v129
    %v132 = vld [vmem:[%s3] sm:$0xf]
    %v133 = vld [vmem:[%s3 + $0x4] sm:$0xf]
    %v134 = vld [vmem:[%s3 + $0x8] sm:$0xf]
    %v135 = vld [vmem:[%s3 + $0xc] sm:$0xf]
    %v136 = vld [vmem:[%s3 + $0x10] sm:$0xf]
    %v137 = vld [vmem:[%s3 + $0x14] sm:$0xf]
    %v138 = vld [vmem:[%s3 + $0x18] sm:$0xf]
    %v139 = vld [vmem:[%s3 + $0x1c] sm:$0xf]
    %v140 = vld [vmem:[#allocation5] sm:$0x1]
    %v142 = vlaneseq
    %v143 = vshrl.u32 %v142, 7
    %v144 = vsub.s32 0, %v143
    %v145 = vrot.slane %v140, %v144
    %v155 = vunpack.c.l.b16 %v132
    %v156 = vunpack.c.l.b16 %v133
    %v157 = vunpack.c.l.b16 %v134
    %v158 = vunpack.c.l.b16 %v135
    %v159 = vunpack.c.l.b16 %v136
    %v160 = vunpack.c.l.b16 %v137
    %v161 = vunpack.c.l.b16 %v138
    %v162 = vunpack.c.l.b16 %v139
    %v163 = vpack.c.b16 %v156, %v155
    %v164 = vpack.c.b16 %v158, %v157
    %v165 = vpack.c.b16 %v160, %v159
    %v166 = vpack.c.b16 %v162, %v161
    %vm171 = vcmask 523264
    %v173 = vsel %vm171, %v131, 0
    %175 = vmatprep.subr.bf16.mxu0 0
    %176 = vmatpush1.bf16.msra.mxu0 0
    %177 = vmatprep.subr.bf16.mxu0 0
    %178 = vmatpush1.bf16.msra.mxu0 0
    %179 = vmatprep.subr.bf16.mxu0 0
    %180 = vmatpush1.bf16.msra.mxu0 0
    %181 = vmatprep.subr.bf16.mxu0 0
    %182 = vmatpush1.bf16.msra.mxu0 0
    %183 = vmatprep.subr.bf16.mxu0 0
    %184 = vmatpush1.bf16.msra.mxu0 %v166
    %185 = vmatprep.subr.bf16.mxu0 0
    %186 = vmatpush1.bf16.msra.mxu0 %v165
    %187 = vmatprep.subr.bf16.mxu0 0
    %188 = vmatpush1.bf16.msra.mxu0 %v164
    %189 = vmatprep.subr.bf16.mxu0 0
    %190 = vmatpush1.bf16.msra.mxu0 %v163
    %191 = vmatprep.subr.bf16.mxu0 0
    %192 = vmatpush2.bf16.msra.mxu0 0
    %193 = vmatprep.subr.bf16.mxu0 0
    %194 = vmatpush2.bf16.msra.mxu0 0
    %195 = vmatprep.subr.bf16.mxu0 0
    %196 = vmatpush2.bf16.msra.mxu0 0
    %197 = vmatprep.subr.bf16.mxu0 0
    %198 = vmatpush2.bf16.msra.mxu0 0
    %199 = vmatprep.subr.bf16.mxu0 0
    %200 = vmatpush2.bf16.msra.mxu0 0
    %201 = vmatprep.subr.bf16.mxu0 0
    %202 = vmatpush2.bf16.msra.mxu0 0
    %203 = vmatprep.subr.bf16.mxu0 0
    %204 = vmatpush2.bf16.msra.mxu0 0
    %205 = vmatprep.subr.bf16.mxu0 0
    %206 = vmatpush2.bf16.msra.mxu0 0
    %207 = vmatprep.mubr.bf16.mxu0 0
    %208 = vmatmul.mubr.bf16.gmra.mxu0 %v173
    %v209 = vpop.f32.mrf.mxu0
    %v210 = vadd.f32 %v145, %v209
    %v211 = vpop.f32.mrf.mxu0
    %v212 = vpop.f32.mrf.mxu0
    %v213 = vadd.f32 %v145, %v212
    %v214 = vpop.f32.mrf.mxu0
    %215 = vdwg.mxu0
    %v216 = vmax.f32 %v210, 0.0
    %v217 = vmax.f32 %v213, 0.0
    %v218 = vpack.c.bf16 %v217, %v216
    %v219 = vld [vmem:[%s5] sm:$0xf]
    %v220 = vld [vmem:[%s5 + $0x4] sm:$0xf]
    %v221 = vld [vmem:[%s5 + $0x8] sm:$0xf]
    %v222 = vld [vmem:[%s5 + $0xc] sm:$0xf]
    %v223 = vld [vmem:[%s5 + $0x10] sm:$0xf]
    %v224 = vld [vmem:[%s5 + $0x14] sm:$0xf]
    %v225 = vld [vmem:[%s5 + $0x18] sm:$0xf]
    %v226 = vld [vmem:[%s5 + $0x1c] sm:$0xf]
    %v227 = vld [vmem:[%s6] sm:$0x1]
    %v229 = vlaneseq
    %v230 = vshrl.u32 %v229, 7
    %v231 = vsub.s32 0, %v230
    %v232 = vrot.slane %v227, %v231
    %v242 = vunpack.c.l.b16 %v219
    %v243 = vunpack.c.l.b16 %v220
    %v244 = vunpack.c.l.b16 %v221
    %v245 = vunpack.c.l.b16 %v222
    %v246 = vunpack.c.l.b16 %v223
    %v247 = vunpack.c.l.b16 %v224
    %v248 = vunpack.c.l.b16 %v225
    %v249 = vunpack.c.l.b16 %v226
    %v250 = vpack.c.b16 %v243, %v242
    %v251 = vpack.c.b16 %v245, %v244
    %v252 = vpack.c.b16 %v247, %v246
    %v253 = vpack.c.b16 %v249, %v248
    %v259 = vsel %vm171, %v218, 0
    %261 = vmatprep.subr.bf16.mxu0 0
    %262 = vmatpush1.bf16.msra.mxu0 0
    %263 = vmatprep.subr.bf16.mxu0 0
    %264 = vmatpush1.bf16.msra.mxu0 0
    %265 = vmatprep.subr.bf16.mxu0 0
    %266 = vmatpush1.bf16.msra.mxu0 0
    %267 = vmatprep.subr.bf16.mxu0 0
    %268 = vmatpush1.bf16.msra.mxu0 0
    %269 = vmatprep.subr.bf16.mxu0 0
    %270 = vmatpush1.bf16.msra.mxu0 %v253
    %271 = vmatprep.subr.bf16.mxu0 0
    %272 = vmatpush1.bf16.msra.mxu0 %v252
    %273 = vmatprep.subr.bf16.mxu0 0
    %274 = vmatpush1.bf16.msra.mxu0 %v251
    %275 = vmatprep.subr.bf16.mxu0 0
    %276 = vmatpush1.bf16.msra.mxu0 %v250
    %277 = vmatprep.subr.bf16.mxu0 0
    %278 = vmatpush2.bf16.msra.mxu0 0
    %279 = vmatprep.subr.bf16.mxu0 0
    %280 = vmatpush2.bf16.msra.mxu0 0
    %281 = vmatprep.subr.bf16.mxu0 0
    %282 = vmatpush2.bf16.msra.mxu0 0
    %283 = vmatprep.subr.bf16.mxu0 0
    %284 = vmatpush2.bf16.msra.mxu0 0
    %285 = vmatprep.subr.bf16.mxu0 0
    %286 = vmatpush2.bf16.msra.mxu0 0
    %287 = vmatprep.subr.bf16.mxu0 0
    %288 = vmatpush2.bf16.msra.mxu0 0
    %289 = vmatprep.subr.bf16.mxu0 0
    %290 = vmatpush2.bf16.msra.mxu0 0
    %291 = vmatprep.subr.bf16.mxu0 0
    %292 = vmatpush2.bf16.msra.mxu0 0
    %293 = vmatprep.mubr.bf16.mxu0 0
    %294 = vmatmul.mubr.bf16.gmra.mxu0 %v259
    %v295 = vpop.f32.mrf.mxu0
    %v296 = vadd.f32 %v232, %v295
    %v297 = vpop.f32.mrf.mxu0
    %v298 = vpop.f32.mrf.mxu0
    %v299 = vadd.f32 %v232, %v298
    %v300 = vpop.f32.mrf.mxu0
    %301 = vdwg.mxu0
    %vm302 = vcmask 130048
    %303 = vst.msk [vmem:[#allocation7] sm:$0xff] %vm302, %v296
    %304 = vst.msk [vmem:[#allocation7 + $0x8] sm:$0xff] %vm302, %v299
    // Predicated region
    $region38: #{tpu_custom_call.1} parent=1 // pred_check
      _
    $region39: #{tpu_custom_call.1} parent=1 // pred_check_branch
      %306 = sbr.rel (0) target = $region41
    $region40: #{tpu_custom_call.1} parent=1 // pred_region
      %s308 = ssub.s32 256, 256
      %309 = vsyncadd [#allocation4], %s308
      %s310 = sshll.u32 [#allocation7], 4
      %s311 = int_to_ptr.vmem [resolvable:$true] %s310
      %316 = dma.vmem_to_hbm [thread:$0]  %s311, 256, %s7, [#allocation4], 128, 128, 8
    $region41: #{tpu_custom_call.1} parent=1 // pred_fallthru
      _
    // Predicated region
    $region42: #{tpu_custom_call.1} parent=1 // pred_check
      _
    $region43: #{tpu_custom_call.1} parent=1 // pred_check_branch
      %318 = sbr.rel (0) target = $region45
    $region44: #{tpu_custom_call.1} parent=1 // pred_region
      %319 = dma.done [#allocation4], 256
    $region45: #{tpu_custom_call.1} parent=1 // pred_fallthru
      _
    %320 = vsyncpa [#allocation3], 1
    %321 = vsyncpa [#allocation6], 1
    %322 = vsyncpa [#allocation4], 1

// kernel: tpu_custom_call.1
$region0: #{tpu_custom_call.1}
  #allocation0 [shape = 'u32[]', space=smem, size = 0x4, offset = 0x4, fixed_abs, tag = 'smem constant byte address 0x4 - core index']
  #allocation1 [shape = 'u32[144,128]{1,0:T(1,128)}', space=vmem, size = 0x12000, scoped, tag = 'internal scratch']
  %s0 = inlined_call_operand.vmem [shape: bf16[16,32], index: 0, kind: input, shape index: {}]
  %s1 = inlined_call_operand.hbm [shape: bf16[32,64], index: 1, kind: input, shape index: {}]
  %s2 = inlined_call_operand.vmem [shape: f32[1,64], index: 2, kind: input, shape index: {}]
  %s3 = inlined_call_operand.vmem [shape: bf16[64,64], index: 3, kind: input, shape index: {}]
  %s4 = inlined_call_operand.hbm [shape: f32[1,64], index: 4, kind: input, shape index: {}]
  %s5 = inlined_call_operand.vmem [shape: bf16[64,16], index: 5, kind: input, shape index: {}]
  %s6 = inlined_call_operand.vmem [shape: f32[1,16], index: 6, kind: input, shape index: {}]
  %s7 = inlined_call_operand.hbm [shape: f32[16,16], index: 7, kind: output, shape index: {}]
  %s8 = sld [smem:[#allocation0]]
  $region46: #{tpu_custom_call.1} parent=0
    _
  %s10 = ssub.s32 1, %s8
  %s11 = scalar_select 0, %s10, %s8
  $region1: #{tpu_custom_call.1} parent=0
    #allocation2 [shape = 'u8[8192]{0}', space=vmem, size = 0x2000, scoped, tag = 'input window, operand 1, single buffered']
    #allocation3 [shape = 's32[1]{0}', space=sflag, size = 0x4, scoped, tag = 'scoped memory for tpu_custom_call.1']
    #allocation4 [shape = 's32[1]{0}', space=sflag, size = 0x4, scoped, tag = 'scoped memory for tpu_custom_call.1']
    #allocation5 [shape = 'u8[512]{0}', space=vmem, size = 0x400, scoped, tag = 'input window, operand 4, single buffered']
    #allocation6 [shape = 's32[1]{0}', space=sflag, size = 0x4, scoped, tag = 'scoped memory for tpu_custom_call.1']
    #allocation7 [shape = 'u8[8192]{0}', space=vmem, size = 0x2000, scoped, tag = 'output window, operand 0, single buffered']
    %12 = vsyncpa [#allocation3], 0
    %13 = vsyncpa [#allocation6], 0
    %14 = vsyncpa [#allocation4], 0
    // Predicated region
    $region2: #{tpu_custom_call.1} parent=1 // pred_check
      _
    $region3: #{tpu_custom_call.1} parent=1 // pred_check_branch
      %16 = sbr.rel (0) target = $region5
    $region4: #{tpu_custom_call.1} parent=1 // pred_region
      _
    $region5: #{tpu_custom_call.1} parent=1 // pred_fallthru
      _
    // Predicated region
    $region6: #{tpu_custom_call.1} parent=1 // pred_check
      _
    $region7: #{tpu_custom_call.1} parent=1 // pred_check_branch
      %18 = sbr.rel (0) target = $region9
    $region8: #{tpu_custom_call.1} parent=1 // pred_region
      %s20 = ssub.s32 256, 256
      %21 = vsyncadd [#allocation3], %s20
      %s22 = sshll.u32 [#allocation2], 4
      %s23 = int_to_ptr.vmem [resolvable:$true] %s22
      %28 = dma.hbm_to_vmem [thread:$0]  %s1, 256, %s23, [#allocation3], 64, 64, 4
    $region9: #{tpu_custom_call.1} parent=1 // pred_fallthru
      _
    // Predicated region
    $region10: #{tpu_custom_call.1} parent=1 // pred_check
      _
    $region11: #{tpu_custom_call.1} parent=1 // pred_check_branch
      %30 = sbr.rel (0) target = $region13
    $region12: #{tpu_custom_call.1} parent=1 // pred_region
      _
    $region13: #{tpu_custom_call.1} parent=1 // pred_fallthru
      _
    // Predicated region
    $region14: #{tpu_custom_call.1} parent=1 // pred_check
      _
    $region15: #{tpu_custom_call.1} parent=1 // pred_check_branch
      %32 = sbr.rel (0) target = $region17
    $region16: #{tpu_custom_call.1} parent=1 // pred_region
      _
    $region17: #{tpu_custom_call.1} parent=1 // pred_fallthru
      _
    // Predicated region
    $region18: #{tpu_custom_call.1} parent=1 // pred_check
      _
    $region19: #{tpu_custom_call.1} parent=1 // pred_check_branch
      %34 = sbr.rel (0) target = $region21
    $region20: #{tpu_custom_call.1} parent=1 // pred_region
      %s36 = ssub.s32 16, 16
      %37 = vsyncadd [#allocation6], %s36
      %s39 = sshll.u32 [#allocation5], 4
      %s40 = int_to_ptr.vmem [resolvable:$true] %s39
      %42 = dma.hbm_to_vmem [thread:$0]  %s4, 16, %s40, [#allocation6]
    $region21: #{tpu_custom_call.1} parent=1 // pred_fallthru
      _
    // Predicated region
    $region22: #{tpu_custom_call.1} parent=1 // pred_check
      _
    $region23: #{tpu_custom_call.1} parent=1 // pred_check_branch
      %44 = sbr.rel (0) target = $region25
    $region24: #{tpu_custom_call.1} parent=1 // pred_region
      _
    $region25: #{tpu_custom_call.1} parent=1 // pred_fallthru
      _
    // Predicated region
    $region26: #{tpu_custom_call.1} parent=1 // pred_check
      _
    $region27: #{tpu_custom_call.1} parent=1 // pred_check_branch
      %46 = sbr.rel (0) target = $region29
    $region28: #{tpu_custom_call.1} parent=1 // pred_region
      _
    $region29: #{tpu_custom_call.1} parent=1 // pred_fallthru
      _
    // Predicated region
    $region30: #{tpu_custom_call.1} parent=1 // pred_check
      _
    $region31: #{tpu_custom_call.1} parent=1 // pred_check_branch
      %48 = sbr.rel (0) target = $region33
    $region32: #{tpu_custom_call.1} parent=1 // pred_region
      %49 = dma.done [#allocation3], 256
    $region33: #{tpu_custom_call.1} parent=1 // pred_fallthru
      _
    // Predicated region
    $region34: #{tpu_custom_call.1} parent=1 // pred_check
      _
    $region35: #{tpu_custom_call.1} parent=1 // pred_check_branch
      %51 = sbr.rel (0) target = $region37
    $region36: #{tpu_custom_call.1} parent=1 // pred_region
      %52 = dma.done [#allocation6], 16
    $region37: #{tpu_custom_call.1} parent=1 // pred_fallthru
      _
    %v54 = vld [vmem:[%s0] sm:$0xf]
    %v55 = vld [vmem:[%s0 + $0x4] sm:$0xf]
    %v56 = vld [vmem:[#allocation2] sm:$0xf]
    %v57 = vld [vmem:[#allocation2 + $0x4] sm:$0xf]
    %v58 = vld [vmem:[#allocation2 + $0x8] sm:$0xf]
    %v59 = vld [vmem:[#allocation2 + $0xc] sm:$0xf]
    %v60 = vld [vmem:[%s2] sm:$0x1]
    %v62 = vlaneseq
    %v63 = vshrl.u32 %v62, 7
    %v64 = vsub.s32 0, %v63
    %v65 = vrot.slane %v60, %v64
    %v69 = vunpack.c.l.b16 %v54
    %v70 = vunpack.c.l.b16 %v55
    %v71 = vpack.c.b16 %v70, %v69
    %v76 = vunpack.c.l.b16 %v56
    %v77 = vunpack.c.l.b16 %v57
    %v78 = vunpack.c.l.b16 %v58
    %v79 = vunpack.c.l.b16 %v59
    %v80 = vpack.c.b16 %v77, %v76
    %v81 = vpack.c.b16 %v79, %v78
    %vm84 = vcmask 261120
    %v86 = vsel %vm84, %v71, 0
    %88 = vmatprep.subr.bf16.mxu0 0
    %89 = vmatpush1.bf16.msra.mxu0 0
    %90 = vmatprep.subr.bf16.mxu0 0
    %91 = vmatpush1.bf16.msra.mxu0 0
    %92 = vmatprep.subr.bf16.mxu0 0
    %93 = vmatpush1.bf16.msra.mxu0 0
    %94 = vmatprep.subr.bf16.mxu0 0
    %95 = vmatpush1.bf16.msra.mxu0 0
    %96 = vmatprep.subr.bf16.mxu0 0
    %97 = vmatpush1.bf16.msra.mxu0 0
    %98 = vmatprep.subr.bf16.mxu0 0
    %99 = vmatpush1.bf16.msra.mxu0 0
    %100 = vmatprep.subr.bf16.mxu0 0
    %101 = vmatpush1.bf16.msra.mxu0 %v81
    %102 = vmatprep.subr.bf16.mxu0 0
    %103 = vmatpush1.bf16.msra.mxu0 %v80
    %104 = vmatprep.subr.bf16.mxu0 0
    %105 = vmatpush2.bf16.msra.mxu0 0
    %106 = vmatprep.subr.bf16.mxu0 0
    %107 = vmatpush2.bf16.msra.mxu0 0
    %108 = vmatprep.subr.bf16.mxu0 0
    %109 = vmatpush2.bf16.msra.mxu0 0
    %110 = vmatprep.subr.bf16.mxu0 0
    %111 = vmatpush2.bf16.msra.mxu0 0
    %112 = vmatprep.subr.bf16.mxu0 0
    %113 = vmatpush2.bf16.msra.mxu0 0
    %114 = vmatprep.subr.bf16.mxu0 0
    %115 = vmatpush2.bf16.msra.mxu0 0
    %116 = vmatprep.subr.bf16.mxu0 0
    %117 = vmatpush2.bf16.msra.mxu0 0
    %118 = vmatprep.subr.bf16.mxu0 0
    %119 = vmatpush2.bf16.msra.mxu0 0
    %120 = vmatprep.mubr.bf16.mxu0 0
    %121 = vmatmul.mubr.bf16.gmra.mxu0 %v86
    %v122 = vpop.f32.mrf.mxu0
    %v123 = vadd.f32 %v65, %v122
    %v124 = vpop.f32.mrf.mxu0
    %v125 = vpop.f32.mrf.mxu0
    %v126 = vadd.f32 %v65, %v125
    %v127 = vpop.f32.mrf.mxu0
    %128 = vdwg.mxu0
    %v129 = vmax.f32 %v123, 0.0
    %v130 = vmax.f32 %v126, 0.0
    %v131 = vpack.c.bf16 %v130, %v129
    %v132 = vld [vmem:[%s3] sm:$0xf]
    %v133 = vld [vmem:[%s3 + $0x4] sm:$0xf]
    %v134 = vld [vmem:[%s3 + $0x8] sm:$0xf]
    %v135 = vld [vmem:[%s3 + $0xc] sm:$0xf]
    %v136 = vld [vmem:[%s3 + $0x10] sm:$0xf]
    %v137 = vld [vmem:[%s3 + $0x14] sm:$0xf]
    %v138 = vld [vmem:[%s3 + $0x18] sm:$0xf]
    %v139 = vld [vmem:[%s3 + $0x1c] sm:$0xf]
    %v140 = vld [vmem:[#allocation5] sm:$0x1]
    %v142 = vlaneseq
    %v143 = vshrl.u32 %v142, 7
    %v144 = vsub.s32 0, %v143
    %v145 = vrot.slane %v140, %v144
    %v155 = vunpack.c.l.b16 %v132
    %v156 = vunpack.c.l.b16 %v133
    %v157 = vunpack.c.l.b16 %v134
    %v158 = vunpack.c.l.b16 %v135
    %v159 = vunpack.c.l.b16 %v136
    %v160 = vunpack.c.l.b16 %v137
    %v161 = vunpack.c.l.b16 %v138
    %v162 = vunpack.c.l.b16 %v139
    %v163 = vpack.c.b16 %v156, %v155
    %v164 = vpack.c.b16 %v158, %v157
    %v165 = vpack.c.b16 %v160, %v159
    %v166 = vpack.c.b16 %v162, %v161
    %vm171 = vcmask 523264
    %v173 = vsel %vm171, %v131, 0
    %175 = vmatprep.subr.bf16.mxu0 0
    %176 = vmatpush1.bf16.msra.mxu0 0
    %177 = vmatprep.subr.bf16.mxu0 0
    %178 = vmatpush1.bf16.msra.mxu0 0
    %179 = vmatprep.subr.bf16.mxu0 0
    %180 = vmatpush1.bf16.msra.mxu0 0
    %181 = vmatprep.subr.bf16.mxu0 0
    %182 = vmatpush1.bf16.msra.mxu0 0
    %183 = vmatprep.subr.bf16.mxu0 0
    %184 = vmatpush1.bf16.msra.mxu0 %v166
    %185 = vmatprep.subr.bf16.mxu0 0
    %186 = vmatpush1.bf16.msra.mxu0 %v165
    %187 = vmatprep.subr.bf16.mxu0 0
    %188 = vmatpush1.bf16.msra.mxu0 %v164
    %189 = vmatprep.subr.bf16.mxu0 0
    %190 = vmatpush1.bf16.msra.mxu0 %v163
    %191 = vmatprep.subr.bf16.mxu0 0
    %192 = vmatpush2.bf16.msra.mxu0 0
    %193 = vmatprep.subr.bf16.mxu0 0
    %194 = vmatpush2.bf16.msra.mxu0 0
    %195 = vmatprep.subr.bf16.mxu0 0
    %196 = vmatpush2.bf16.msra.mxu0 0
    %197 = vmatprep.subr.bf16.mxu0 0
    %198 = vmatpush2.bf16.msra.mxu0 0
    %199 = vmatprep.subr.bf16.mxu0 0
    %200 = vmatpush2.bf16.msra.mxu0 0
    %201 = vmatprep.subr.bf16.mxu0 0
    %202 = vmatpush2.bf16.msra.mxu0 0
    %203 = vmatprep.subr.bf16.mxu0 0
    %204 = vmatpush2.bf16.msra.mxu0 0
    %205 = vmatprep.subr.bf16.mxu0 0
    %206 = vmatpush2.bf16.msra.mxu0 0
    %207 = vmatprep.mubr.bf16.mxu0 0
    %208 = vmatmul.mubr.bf16.gmra.mxu0 %v173
    %v209 = vpop.f32.mrf.mxu0
    %v210 = vadd.f32 %v145, %v209
    %v211 = vpop.f32.mrf.mxu0
    %v212 = vpop.f32.mrf.mxu0
    %v213 = vadd.f32 %v145, %v212
    %v214 = vpop.f32.mrf.mxu0
    %215 = vdwg.mxu0
    %v216 = vmax.f32 %v210, 0.0
    %v217 = vmax.f32 %v213, 0.0
    %v218 = vpack.c.bf16 %v217, %v216
    %v219 = vld [vmem:[%s5] sm:$0xf]
    %v220 = vld [vmem:[%s5 + $0x4] sm:$0xf]
    %v221 = vld [vmem:[%s5 + $0x8] sm:$0xf]
    %v222 = vld [vmem:[%s5 + $0xc] sm:$0xf]
    %v223 = vld [vmem:[%s5 + $0x10] sm:$0xf]
    %v224 = vld [vmem:[%s5 + $0x14] sm:$0xf]
    %v225 = vld [vmem:[%s5 + $0x18] sm:$0xf]
    %v226 = vld [vmem:[%s5 + $0x1c] sm:$0xf]
    %v227 = vld [vmem:[%s6] sm:$0x1]
    %v229 = vlaneseq
    %v230 = vshrl.u32 %v229, 7
    %v231 = vsub.s32 0, %v230
    %v232 = vrot.slane %v227, %v231
    %v242 = vunpack.c.l.b16 %v219
    %v243 = vunpack.c.l.b16 %v220
    %v244 = vunpack.c.l.b16 %v221
    %v245 = vunpack.c.l.b16 %v222
    %v246 = vunpack.c.l.b16 %v223
    %v247 = vunpack.c.l.b16 %v224
    %v248 = vunpack.c.l.b16 %v225
    %v249 = vunpack.c.l.b16 %v226
    %v250 = vpack.c.b16 %v243, %v242
    %v251 = vpack.c.b16 %v245, %v244
    %v252 = vpack.c.b16 %v247, %v246
    %v253 = vpack.c.b16 %v249, %v248
    %v259 = vsel %vm171, %v218, 0
    %261 = vmatprep.subr.bf16.mxu0 0
    %262 = vmatpush1.bf16.msra.mxu0 0
    %263 = vmatprep.subr.bf16.mxu0 0
    %264 = vmatpush1.bf16.msra.mxu0 0
    %265 = vmatprep.subr.bf16.mxu0 0
    %266 = vmatpush1.bf16.msra.mxu0 0
    %267 = vmatprep.subr.bf16.mxu0 0
    %268 = vmatpush1.bf16.msra.mxu0 0
    %269 = vmatprep.subr.bf16.mxu0 0
    %270 = vmatpush1.bf16.msra.mxu0 %v253
    %271 = vmatprep.subr.bf16.mxu0 0
    %272 = vmatpush1.bf16.msra.mxu0 %v252
    %273 = vmatprep.subr.bf16.mxu0 0
    %274 = vmatpush1.bf16.msra.mxu0 %v251
    %275 = vmatprep.subr.bf16.mxu0 0
    %276 = vmatpush1.bf16.msra.mxu0 %v250
    %277 = vmatprep.subr.bf16.mxu0 0
    %278 = vmatpush2.bf16.msra.mxu0 0
    %279 = vmatprep.subr.bf16.mxu0 0
    %280 = vmatpush2.bf16.msra.mxu0 0
    %281 = vmatprep.subr.bf16.mxu0 0
    %282 = vmatpush2.bf16.msra.mxu0 0
    %283 = vmatprep.subr.bf16.mxu0 0
    %284 = vmatpush2.bf16.msra.mxu0 0
    %285 = vmatprep.subr.bf16.mxu0 0
    %286 = vmatpush2.bf16.msra.mxu0 0
    %287 = vmatprep.subr.bf16.mxu0 0
    %288 = vmatpush2.bf16.msra.mxu0 0
    %289 = vmatprep.subr.bf16.mxu0 0
    %290 = vmatpush2.bf16.msra.mxu0 0
    %291 = vmatprep.subr.bf16.mxu0 0
    %292 = vmatpush2.bf16.msra.mxu0 0
    %293 = vmatprep.mubr.bf16.mxu0 0
    %294 = vmatmul.mubr.bf16.gmra.mxu0 %v259
    %v295 = vpop.f32.mrf.mxu0
    %v296 = vadd.f32 %v232, %v295
    %v297 = vpop.f32.mrf.mxu0
    %v298 = vpop.f32.mrf.mxu0
    %v299 = vadd.f32 %v232, %v298
    %v300 = vpop.f32.mrf.mxu0
    %301 = vdwg.mxu0
    %vm302 = vcmask 130048
    %303 = vst.msk [vmem:[#allocation7] sm:$0xff] %vm302, %v296
    %304 = vst.msk [vmem:[#allocation7 + $0x8] sm:$0xff] %vm302, %v299
    // Predicated region
    $region38: #{tpu_custom_call.1} parent=1 // pred_check
      _
    $region39: #{tpu_custom_call.1} parent=1 // pred_check_branch
      %306 = sbr.rel (0) target = $region41
    $region40: #{tpu_custom_call.1} parent=1 // pred_region
      %s308 = ssub.s32 256, 256
      %309 = vsyncadd [#allocation4], %s308
      %s310 = sshll.u32 [#allocation7], 4
      %s311 = int_to_ptr.vmem [resolvable:$true] %s310
      %316 = dma.vmem_to_hbm [thread:$0]  %s311, 256, %s7, [#allocation4], 128, 128, 8
    $region41: #{tpu_custom_call.1} parent=1 // pred_fallthru
      _
    // Predicated region
    $region42: #{tpu_custom_call.1} parent=1 // pred_check
      _
    $region43: #{tpu_custom_call.1} parent=1 // pred_check_branch
      %318 = sbr.rel (0) target = $region45
    $region44: #{tpu_custom_call.1} parent=1 // pred_region
      %319 = dma.done [#allocation4], 256
    $region45: #{tpu_custom_call.1} parent=1 // pred_fallthru
      _
    %320 = vsyncpa [#allocation3], 1
    %321 = vsyncpa [#allocation6], 1
    %322 = vsyncpa [#allocation4], 1

</llo_original>
